<compile_context>
chip_gen: v7x
topology: tpu7x:2x2x1
jax: 0.10.0
libtpu: 0.0.40
codegen_flags: <defaults>
</compile_context>

<pallas_src>
import functools

import jax
import jax.numpy as jnp
from jax import lax
from jax.experimental import pallas as pl
from jax.experimental.pallas import tpu as pltpu

EPS = 1e-5        # nn.InstanceNorm2d default eps
LANE = 128        # TPU lane width
COL_ALIGN = 16    # bf16 sublane tile -> keeps the in-kernel row shift tile-aligned


def _round_up(x, m):
    return (x + m - 1) // m * m


def _vmem_limit_bytes():
    """Per-generation VMEM budget: physical capacity minus headroom (perf feedback),
    instead of a hard-coded 64 MiB (== all of v7x's VMEM, half of v5e/v6e)."""
    try:
        cap = int(pltpu.get_tpu_info().vmem_capacity_bytes)
    except Exception:          # conservative fallback if the query is unavailable
        cap = 64 * 1024 * 1024
    return max(cap - 16 * 1024 * 1024, cap // 2)


def _conv_down_kernel(s_ref, w_ref, m_ref, o_ref, *, n_rows, row_stride, inv_hw):
    """One grid step == one image (conv + InstanceNorm + ReLU).

    s_ref : (s_rows, 6*Cin)     bf16  space-to-depth image, flattened (Ho+1, Wo_p) rows
    w_ref : (2, 6*Cin, Cout_pad) bf16 per-row-offset weight matrices (VMEM resident)
    m_ref : (8, n_rows)          f32  row 0 = 1.0 on valid output pixels; rows 1..7 zero
    o_ref : (n_rows, Cout_pad)   f32  flattened (Ho, Wo_p) output
    """
    # Conv assembled as 2 accumulating MXU dots over tile-aligned shifted row windows:
    #   rows [0, n_rows)           -> taps kh in {0,1}, kw in {0,1,2}
    #   rows [row_stride, ...)     -> taps kh = 2,      kw in {0,1,2}
    y = jnp.dot(s_ref[pl.ds(0, n_rows), :], w_ref[0],
                preferred_element_type=jnp.float32)
    y = y + jnp.dot(s_ref[pl.ds(row_stride, n_rows), :], w_ref[1],
                    preferred_element_type=jnp.float32)

    # InstanceNorm statistics over the valid pixels only: exact two-pass via masked MXU
    # row-reductions.  (Conv bias omitted entirely: it is exactly cancelled here.)
    m = m_ref[...]
    mean = jnp.dot(m, y, preferred_element_type=jnp.float32)[0:1, :] * inv_hw
    d = y - mean
    var = jnp.dot(m, d * d, preferred_element_type=jnp.float32)[0:1, :] * inv_hw

    # normalize + ReLU epilogue (sub + mul + max per element), lane-dense store
    o_ref[...] = jnp.maximum(d * lax.rsqrt(var + EPS), 0.0)


def conv_down_2(x_nchw, weight, bias=None):
    """Forward pass of Conv_down_2: Conv2d(3x3, s=2, p=1) -> InstanceNorm2d -> ReLU.

    x_nchw : (N, Cin, H, W) float32
    weight : (Cout, Cin, 3, 3) float32  (PyTorch Conv2d layout)
    bias   : (Cout,) float32 -- accepted for interface parity but unused: a per-channel
             bias is exactly cancelled by InstanceNorm2d (affine=False).
    returns: (N, Cout, Ho, Wo) float32
    """
    del bias
    N, Cin, H, W = x_nchw.shape
    Cout = weight.shape[0]
    Ho = (H - 1) // 2 + 1
    Wo = (W - 1) // 2 + 1
    HW = Ho * Wo
    Hs = Ho + 1                        # need space-to-depth rows i and i+1, i < Ho
    Wo_p = _round_up(Wo, COL_ALIGN)    # pad cols so the in-kernel row shift is 16-aligned
    C6 = 6 * Cin                       # (dr in {0,1}) x (dc in {0,1,2}) x Cin
    Cout_pad = _round_up(Cout, LANE)   # lane-dense (unmasked) output stores
    n_rows = Ho * Wo_p                 # flattened output rows computed by the kernel
    s_rows = Hs * Wo_p                 # flattened space-to-depth rows

    # ---- glue: NCHW -> zero-padded bf16 NHWC -> 2x(3-col overlap) space-to-depth ----
    # A ~1x repack of the image (plus 1.5x channel overlap), NOT a 9-patch im2col.
    x_nhwc = jnp.transpose(x_nchw, (0, 2, 3, 1)).astype(jnp.bfloat16)
    xp = jnp.pad(x_nhwc, ((0, 0), (1, 2 * Hs - H - 1), (1, 2 * Wo_p - W), (0, 0)))
    # xp: (N, 2*Hs, 2*Wo_p + 1, Cin); tap (kh, kw) of output (i, j) reads xp[2i+kh, 2j+kw]
    cols = [xp[:, :, dc:dc + 2 * Wo_p:2, :] for dc in range(3)]   # each (N, 2Hs, Wo_p, Cin)
    s = jnp.stack(cols, axis=3)                                   # (N, 2Hs, Wo_p, 3, Cin)
    s = s.reshape(N, Hs, 2, Wo_p, 3, Cin).transpose(0, 1, 3, 2, 4, 5)
    s = s.reshape(N, s_rows, C6)                                  # lane = (dr, dc, cin)

    # Per-offset weight matrices, rows ordered exactly like the s lane packing.
    wt = jnp.transpose(weight, (2, 3, 1, 0)).astype(jnp.float32)  # (kh, kw, Cin, Cout)
    w_top = wt[0:2]                                               # kh in {0,1}
    w_bot = jnp.pad(wt[2:3], ((0, 1), (0, 0), (0, 0), (0, 0)))    # kh=2 at dr=0; dr=1 zero
    w2 = jnp.stack([w_top, w_bot], axis=0).reshape(2, C6, Cout)
    w2 = jnp.pad(w2, ((0, 0), (0, 0), (0, Cout_pad - Cout))).astype(jnp.bfloat16)

    # Valid-pixel mask (columns Wo..Wo_p are layout padding), row 0 only.
    mask = jnp.pad(jnp.ones((Ho, Wo), jnp.float32), ((0, 0), (0, Wo_p - Wo)))
    mask8 = jnp.pad(mask.reshape(1, n_rows), ((0, 7), (0, 0)))    # (8, n_rows)

    kernel = functools.partial(_conv_down_kernel, n_rows=n_rows,
                               row_stride=Wo_p, inv_hw=1.0 / HW)

    out = pl.pallas_call(
        kernel,
        out_shape=jax.ShapeDtypeStruct((N, n_rows, Cout_pad), jnp.float32),
        grid_spec=pltpu.PrefetchScalarGridSpec(
            num_scalar_prefetch=0,
            grid=(N,),
            in_specs=[
                pl.BlockSpec((pl.Squeezed(), s_rows, C6), lambda n: (n, 0, 0)),
                pl.BlockSpec((2, C6, Cout_pad), lambda n: (0, 0, 0)),
                pl.BlockSpec((8, n_rows), lambda n: (0, 0)),
            ],
            out_specs=pl.BlockSpec((pl.Squeezed(), n_rows, Cout_pad),
                                   lambda n: (n, 0, 0)),
        ),
        compiler_params=pltpu.CompilerParams(
            dimension_semantics=("parallel",),
            vmem_limit_bytes=_vmem_limit_bytes()),
    )(s, w2, mask8)

    out = out[:, :, :Cout].reshape(N, Ho, Wo_p, Cout)[:, :, :Wo, :]
    return jnp.transpose(out, (0, 3, 1, 2))                       # back to NCHW


def _reference(x_nchw, weight, bias):
    # pure-JAX reference at the same precision as the kernel (bf16 conv, f32 norm);
    # includes the bias to demonstrate that dropping it in the kernel is exact.
    y = lax.conv_general_dilated(
        x_nchw.astype(jnp.bfloat16), weight.astype(jnp.bfloat16),
        window_strides=(2, 2), padding=((1, 1), (1, 1)),
        dimension_numbers=("NCHW", "OIHW", "NCHW"),
        preferred_element_type=jnp.float32)
    y = y + bias.reshape(1, -1, 1, 1).astype(jnp.float32)
    mean = jnp.mean(y, axis=(2, 3), keepdims=True)
    var = jnp.mean((y - mean) ** 2, axis=(2, 3), keepdims=True)
    return jnp.maximum((y - mean) * lax.rsqrt(var + EPS), 0.0)


if __name__ == "__main__":
    key = jax.random.PRNGKey(0)
    kx, kw, kb = jax.random.split(key, 3)

    N, Cin, H, W = 2, 4, 16, 16
    Cout = 8

    x = jax.random.normal(kx, (N, Cin, H, W), dtype=jnp.float32)
    weight = jax.random.normal(kw, (Cout, Cin, 3, 3), dtype=jnp.float32) * 0.1
    bias = jax.random.normal(kb, (Cout,), dtype=jnp.float32) * 0.1

    out = jax.block_until_ready(conv_down_2(x, weight, bias))

    ref = _reference(x, weight, bias)
    assert out.shape == (N, Cout, H // 2, W // 2), out.shape
    err = float(jnp.max(jnp.abs(out - ref)))
    assert err < 1e-3, err

    print("KERNEL_OK")
</pallas_src>

<mosaic_0001>
module attributes {stable_mosaic.version = 11 : i64} {
  func.func @_conv_down_kernel(%arg0: i32, %arg1: memref<1x144x24xbf16, #tpu.memory_space<vmem>>, %arg2: memref<2x24x128xbf16, #tpu.memory_space<vmem>>, %arg3: memref<8x128xf32, #tpu.memory_space<vmem>>, %arg4: memref<1x128x128xf32, #tpu.memory_space<vmem>>) attributes {dimension_semantics = [#tpu.dimension_semantics<parallel>], iteration_bounds = array<i64: 2>, scalar_prefetch = 0 : i64, scratch_operands = 0 : i64, tpu.core_type = #tpu.core_type<tc>, window_params = [{transform_indices = @transform_0, window_bounds = array<i64: 1, 144, 24>}, {pipeline_mode = #tpu.pipeline_mode<synchronous>, transform_indices = @transform_1, window_bounds = array<i64: 2, 24, 128>}, {pipeline_mode = #tpu.pipeline_mode<synchronous>, transform_indices = @transform_2, window_bounds = array<i64: 8, 128>}, {transform_indices = @transform_3, window_bounds = array<i64: 1, 128, 128>}]} {
    %c0 = arith.constant 0 : index
    %c0_0 = arith.constant 0 : index
    %c0_1 = arith.constant 0 : index
    %0 = vector.load %arg1[%c0, %c0_0, %c0_1] : memref<1x144x24xbf16, #tpu.memory_space<vmem>>, vector<1x128x24xbf16>
    %1 = vector.shape_cast %0 : vector<1x128x24xbf16> to vector<128x24xbf16>
    %c0_2 = arith.constant 0 : index
    %c0_3 = arith.constant 0 : index
    %c0_4 = arith.constant 0 : index
    %2 = vector.load %arg2[%c0_2, %c0_3, %c0_4] : memref<2x24x128xbf16, #tpu.memory_space<vmem>>, vector<1x24x128xbf16>
    %3 = vector.shape_cast %2 : vector<1x24x128xbf16> to vector<24x128xbf16>
    %cst = arith.constant dense<0.000000e+00> : vector<128x128xf32>
    %4 = tpu.matmul %1, %3, %cst {dimension_numbers = #tpu.dot_dimension_numbers<[1], [0], [0], [1], [0, 0, 1, 1], [], []>} : vector<128x24xbf16>, vector<24x128xbf16>, vector<128x128xf32> -> vector<128x128xf32>
    %c0_5 = arith.constant 0 : index
    %c16 = arith.constant 16 : index
    %c0_6 = arith.constant 0 : index
    %5 = vector.load %arg1[%c0_5, %c16, %c0_6] : memref<1x144x24xbf16, #tpu.memory_space<vmem>>, vector<1x128x24xbf16>
    %6 = vector.shape_cast %5 : vector<1x128x24xbf16> to vector<128x24xbf16>
    %c1 = arith.constant 1 : index
    %c0_7 = arith.constant 0 : index
    %c0_8 = arith.constant 0 : index
    %7 = vector.load %arg2[%c1, %c0_7, %c0_8] : memref<2x24x128xbf16, #tpu.memory_space<vmem>>, vector<1x24x128xbf16>
    %8 = vector.shape_cast %7 : vector<1x24x128xbf16> to vector<24x128xbf16>
    %cst_9 = arith.constant dense<0.000000e+00> : vector<128x128xf32>
    %9 = tpu.matmul %6, %8, %cst_9 {dimension_numbers = #tpu.dot_dimension_numbers<[1], [0], [0], [1], [0, 0, 1, 1], [], []>} : vector<128x24xbf16>, vector<24x128xbf16>, vector<128x128xf32> -> vector<128x128xf32>
    %10 = arith.addf %4, %9 : vector<128x128xf32>
    %c0_10 = arith.constant 0 : index
    %c0_11 = arith.constant 0 : index
    %11 = vector.load %arg3[%c0_10, %c0_11] : memref<8x128xf32, #tpu.memory_space<vmem>>, vector<8x128xf32>
    %cst_12 = arith.constant dense<0.000000e+00> : vector<8x128xf32>
    %12 = tpu.matmul %11, %10, %cst_12 {dimension_numbers = #tpu.dot_dimension_numbers<[1], [0], [0], [1], [0, 0, 1, 1], [], []>} : vector<8x128xf32>, vector<128x128xf32>, vector<8x128xf32> -> vector<8x128xf32>
    %13 = vector.extract_strided_slice %12 {offsets = [0, 0], sizes = [1, 128], strides = [1, 1]} : vector<8x128xf32> to vector<1x128xf32>
    %cst_13 = arith.constant 1.562500e-02 : f32
    %14 = vector.broadcast %cst_13 : f32 to vector<1x128xf32>
    %15 = arith.mulf %13, %14 : vector<1x128xf32>
    %16 = vector.broadcast %15 : vector<1x128xf32> to vector<128x128xf32>
    %17 = arith.subf %10, %16 : vector<128x128xf32>
    %18 = arith.mulf %17, %17 : vector<128x128xf32>
    %cst_14 = arith.constant dense<0.000000e+00> : vector<8x128xf32>
    %19 = tpu.matmul %11, %18, %cst_14 {dimension_numbers = #tpu.dot_dimension_numbers<[1], [0], [0], [1], [0, 0, 1, 1], [], []>} : vector<8x128xf32>, vector<128x128xf32>, vector<8x128xf32> -> vector<8x128xf32>
    %20 = vector.extract_strided_slice %19 {offsets = [0, 0], sizes = [1, 128], strides = [1, 1]} : vector<8x128xf32> to vector<1x128xf32>
    %cst_15 = arith.constant 1.562500e-02 : f32
    %21 = vector.broadcast %cst_15 : f32 to vector<1x128xf32>
    %22 = arith.mulf %20, %21 : vector<1x128xf32>
    %cst_16 = arith.constant 9.99999974E-6 : f32
    %23 = vector.broadcast %cst_16 : f32 to vector<1x128xf32>
    %24 = arith.addf %22, %23 : vector<1x128xf32>
    %25 = math.rsqrt %24 : vector<1x128xf32>
    %26 = vector.broadcast %25 : vector<1x128xf32> to vector<128x128xf32>
    %27 = arith.mulf %17, %26 : vector<128x128xf32>
    %cst_17 = arith.constant 0.000000e+00 : f32
    %28 = vector.broadcast %cst_17 : f32 to vector<128x128xf32>
    %29 = arith.maximumf %27, %28 : vector<128x128xf32>
    %c0_18 = arith.constant 0 : index
    %c0_19 = arith.constant 0 : index
    %c0_20 = arith.constant 0 : index
    %30 = vector.load %arg4[%c0_18, %c0_19, %c0_20] : memref<1x128x128xf32, #tpu.memory_space<vmem>>, vector<1x128x128xf32>
    %31 = vector.shape_cast %30 : vector<1x128x128xf32> to vector<128x128xf32>
    %32 = vector.shape_cast %29 : vector<128x128xf32> to vector<1x128x128xf32>
    tpu.vector_store %arg4[%c0_18, %c0_19, %c0_20], %32 {strides = array<i32>} : memref<1x128x128xf32, #tpu.memory_space<vmem>>, vector<1x128x128xf32>,
    return
  }
  func.func @transform_0(%arg0: i32) -> (i32, i32, i32) {
    %c0_i32 = arith.constant 0 : i32
    %c0_i32_0 = arith.constant 0 : i32
    %c0_i32_1 = arith.constant 0 : i32
    return %arg0, %c0_i32, %c0_i32_0 : i32, i32, i32
  }
  func.func @transform_1(%arg0: i32) -> (i32, i32, i32) {
    %c0_i32 = arith.constant 0 : i32
    %c0_i32_0 = arith.constant 0 : i32
    %c0_i32_1 = arith.constant 0 : i32
    %c0_i32_2 = arith.constant 0 : i32
    return %c0_i32, %c0_i32_0, %c0_i32_1 : i32, i32, i32
  }
  func.func @transform_2(%arg0: i32) -> (i32, i32) {
    %c0_i32 = arith.constant 0 : i32
    %c0_i32_0 = arith.constant 0 : i32
    %c0_i32_1 = arith.constant 0 : i32
    return %c0_i32, %c0_i32_0 : i32, i32
  }
  func.func @transform_3(%arg0: i32) -> (i32, i32, i32) {
    %c0_i32 = arith.constant 0 : i32
    %c0_i32_0 = arith.constant 0 : i32
    %c0_i32_1 = arith.constant 0 : i32
    return %arg0, %c0_i32, %c0_i32_0 : i32, i32, i32
  }
}

</mosaic_0001>

<llo_original>
// kernel: tpu_custom_call.1
$region0: #{tpu_custom_call.1}
  #allocation0 [shape = 'u32[]', space=smem, size = 0x4, offset = 0x4, fixed_abs, tag = 'smem constant byte address 0x4 - core index']
  #allocation1 [shape = 'u32[144,128]{1,0:T(1,128)}', space=vmem, size = 0x12000, scoped, tag = 'internal scratch']
  %s0 = inlined_call_operand.vmem [shape: bf16[2,144,24], index: 0, kind: input, shape index: {}]
  %s1 = inlined_call_operand.vmem [shape: bf16[2,24,128], index: 1, kind: input, shape index: {}]
  %s2 = inlined_call_operand.vmem [shape: f32[8,128], index: 2, kind: input, shape index: {}]
  %s3 = inlined_call_operand.hbm [shape: f32[2,128,128], index: 3, kind: output, shape index: {}]
  %s4 = sld [smem:[#allocation0]]
  $region45: #{tpu_custom_call.1} parent=0
    _
  %s6 = ssub.s32 1, %s4
  %s7 = scalar_select 0, %s6, %s4
  $region1: #{tpu_custom_call.1} parent=0
    #allocation2 [shape = 'u8[131072]{0}', space=vmem, size = 0x20000, scoped, tag = 'output window, operand 0']
    #allocation3 [shape = 's32[2]{0}', space=sflag, size = 0x8, scoped, tag = 'scoped memory for tpu_custom_call.1']
    %8 = vsyncpa [#allocation3], 0
    %s9 = scalar_lea.sflag [#allocation3], 1
    %10 = vsyncpa %s9, 0
    loop: start=0, step=1, limit=4
    $region2: #{tpu_custom_call.1} parent=1 // loop_pre_header
      _
    $region3: #{tpu_custom_call.1} parent=1 // loop_header
      %s12 = sphi 0, %s16
      %p13 = scmp.ge.s32.totalorder %s12, 4
      %s22 = sphi 0, %s24
      %s25 = sphi 0, %s22
      %s26 = sphi 0, %s25
      %s42 = sphi 0, %s26
      %s46 = sphi 0, %s46
      %s48 = sphi 0, %s46
      %s49 = sphi 0, %s48
      %s63 = sphi 0, %s49
      %s67 = sphi 0, %s67
      %s69 = sphi 0, %s67
      %s70 = sphi 0, %s69
      %s84 = sphi 0, %s70
      %s90 = sphi 0, %s92
      %s93 = sphi 0, %s90
      %s94 = sphi 0, %s93
      %s110 = sphi 0, %s94
    $region4: #{tpu_custom_call.1} parent=1 // loop_header_branch
      %15 = sbr.rel (%p13) target = $region8
    $region5: #{tpu_custom_call.1} parent=1 // loop_body
      %s17 = ssub.s32 %s12, 1
      %s18 = ssub.s32 %s12, 2
      %s19 = sadd.s32 %s12, 1
      %s20 = ssub.s32 %s12, %s19
      %p21 = scmp.eq.s32.totalorder %s20, 0
      %s23 = sadd.s32 %s22, 1
      %s24 = scalar_select %p21, %s22, %s23
      %p27 = pneg %p21
      %p28 = scmp.eq.s32.totalorder %s12, 1
      %p29 = por %p27, %p28
      %p30 = scmp.ne.s32.totalorder %s22, %s25
      %p31 = scmp.eq.s32.totalorder %s12, 0
      %p32 = por %p30, %p31
      %p33 = scmp.ne.s32.totalorder %s22, %s25
      %p34 = scmp.eq.s32.totalorder %s17, 1
      %p35 = por %p33, %p34
      %p36 = scmp.ne.s32.totalorder %s25, %s26
      %p37 = scmp.eq.s32.totalorder %s17, 0
      %p38 = por %p36, %p37
      %p39 = scmp.ne.s32.totalorder %s25, %s26
      %p40 = scmp.eq.s32.totalorder %s18, 1
      %p41 = por %p39, %p40
      %p43 = scmp.ne.s32.totalorder %s26, %s42
      %p44 = scmp.eq.s32.totalorder %s18, 0
      %p45 = por %p43, %p44
      %s47 = sadd.s32 %s46, 1
      %p50 = scmp.eq.s32.totalorder %s12, 1
      %p51 = scmp.ne.s32.totalorder %s46, %s48
      %p52 = scmp.eq.s32.totalorder %s12, 0
      %p53 = por %p51, %p52
      %p54 = scmp.ne.s32.totalorder %s46, %s48
      %p55 = scmp.eq.s32.totalorder %s17, 1
      %p56 = por %p54, %p55
      %p57 = scmp.ne.s32.totalorder %s48, %s49
      %p58 = scmp.eq.s32.totalorder %s17, 0
      %p59 = por %p57, %p58
      %p60 = scmp.ne.s32.totalorder %s48, %s49
      %p61 = scmp.eq.s32.totalorder %s18, 1
      %p62 = por %p60, %p61
      %p64 = scmp.ne.s32.totalorder %s49, %s63
      %p65 = scmp.eq.s32.totalorder %s18, 0
      %p66 = por %p64, %p65
      %s68 = sadd.s32 %s67, 1
      %p71 = scmp.eq.s32.totalorder %s12, 1
      %p72 = scmp.ne.s32.totalorder %s67, %s69
      %p73 = scmp.eq.s32.totalorder %s12, 0
      %p74 = por %p72, %p73
      %p75 = scmp.ne.s32.totalorder %s67, %s69
      %p76 = scmp.eq.s32.totalorder %s17, 1
      %p77 = por %p75, %p76
      %p78 = scmp.ne.s32.totalorder %s69, %s70
      %p79 = scmp.eq.s32.totalorder %s17, 0
      %p80 = por %p78, %p79
      %p81 = scmp.ne.s32.totalorder %s69, %s70
      %p82 = scmp.eq.s32.totalorder %s18, 1
      %p83 = por %p81, %p82
      %p85 = scmp.ne.s32.totalorder %s70, %s84
      %p86 = scmp.eq.s32.totalorder %s18, 0
      %p87 = por %p85, %p86
      %s88 = ssub.s32 %s12, %s19
      %p89 = scmp.eq.s32.totalorder %s88, 0
      %s91 = sadd.s32 %s90, 1
      %s92 = scalar_select %p89, %s90, %s91
      %p95 = pneg %p89
      %p96 = scmp.eq.s32.totalorder %s12, 1
      %p97 = por %p95, %p96
      %p98 = scmp.ne.s32.totalorder %s90, %s93
      %p99 = scmp.eq.s32.totalorder %s12, 0
      %p100 = por %p98, %p99
      %p101 = scmp.ne.s32.totalorder %s90, %s93
      %p102 = scmp.eq.s32.totalorder %s17, 1
      %p103 = por %p101, %p102
      %p104 = scmp.ne.s32.totalorder %s93, %s94
      %p105 = scmp.eq.s32.totalorder %s17, 0
      %p106 = por %p104, %p105
      %p107 = scmp.ne.s32.totalorder %s93, %s94
      %p108 = scmp.eq.s32.totalorder %s18, 1
      %p109 = por %p107, %p108
      %p111 = scmp.ne.s32.totalorder %s94, %s110
      %p112 = scmp.eq.s32.totalorder %s18, 0
      %p113 = por %p111, %p112
      %p114 = scmp.le.s32.totalorder 1, %s12
      %p115 = scmp.lt.s32.totalorder %s12, 3
      %p116 = pnand %p114, %p115
      %p117 = pneg %p116
      // Predicated region
      $region9: #{tpu_custom_call.1} parent=5 // pred_check
        _
      $region10: #{tpu_custom_call.1} parent=5 // pred_check_branch
        %119 = sbr.rel (%p116) target = $region12
      $region11: #{tpu_custom_call.1} parent=5 // pred_region
        %s120 = ssub.s32 %s12, 1
        // Predicated region
        $region13: #{tpu_custom_call.1} parent=11 // pred_check
          %p121 = pneg %p59
        $region14: #{tpu_custom_call.1} parent=11 // pred_check_branch
          %123 = sbr.rel (%p121) target = $region16
        $region15: #{tpu_custom_call.1} parent=11 // pred_region
          _
        $region16: #{tpu_custom_call.1} parent=11 // pred_fallthru
          _
        // Predicated region
        $region17: #{tpu_custom_call.1} parent=11 // pred_check
          %p124 = pneg %p80
        $region18: #{tpu_custom_call.1} parent=11 // pred_check_branch
          %126 = sbr.rel (%p124) target = $region20
        $region19: #{tpu_custom_call.1} parent=11 // pred_region
          _
        $region20: #{tpu_custom_call.1} parent=11 // pred_fallthru
          _
      $region12: #{tpu_custom_call.1} parent=5 // pred_fallthru
        _
      %p127 = scmp.lt.s32.totalorder %s12, 2
      // Predicated region
      $region21: #{tpu_custom_call.1} parent=5 // pred_check
        %p128 = pneg %p127
      $region22: #{tpu_custom_call.1} parent=5 // pred_check_branch
        %130 = sbr.rel (%p128) target = $region24
      $region23: #{tpu_custom_call.1} parent=5 // pred_region
        // Predicated region
        $region25: #{tpu_custom_call.1} parent=23 // pred_check
          %p131 = pneg %p32
        $region26: #{tpu_custom_call.1} parent=23 // pred_check_branch
          %133 = sbr.rel (%p131) target = $region28
        $region27: #{tpu_custom_call.1} parent=23 // pred_region
          %p134 = scmp.lt.s32.totalorder %s12, 1
          %s135 = scalar_select %p134, %s12, 1
          %s136 = smul.addr %s135, 18
          %s137 = smul.addr %s136, 4
          %s138 = scalar_lea.vmem %s0, %s137
        $region28: #{tpu_custom_call.1} parent=23 // pred_fallthru
          _
      $region24: #{tpu_custom_call.1} parent=5 // pred_fallthru
        _
      %p139 = scmp.le.s32.totalorder 1, %s12
      %p140 = scmp.lt.s32.totalorder %s12, 3
      %p141 = pnand %p139, %p140
      %p142 = pneg %p141
      // Predicated region
      $region29: #{tpu_custom_call.1} parent=5 // pred_check
        _
      $region30: #{tpu_custom_call.1} parent=5 // pred_check_branch
        %144 = sbr.rel (%p141) target = $region32
      $region31: #{tpu_custom_call.1} parent=5 // pred_region
        %s145 = ssub.s32 %s12, 1
        %p146 = scmp.lt.s32.totalorder %s17, 1
        %s147 = scalar_select %p146, %s17, 1
        %s148 = smul.addr %s147, 18
        %s149 = smul.addr %s148, 4
        %s150 = scalar_lea.vmem %s0, %s149
        %p151 = pneg %p38
        %p152 = pneg %p35
        %p153 = pneg %p59
        %p154 = pneg %p56
        %p155 = pneg %p80
        %p156 = pneg %p77
        %p157 = pneg %p106
        %p158 = pneg %p103
        %s159 = sand.u32 %s93, 1
        %s160 = scalar_lea.sflag [#allocation3], %s159
        %s161 = sand.u32 %s93, 1
        %s162 = smul.addr %s161, 128
        %s163 = scalar_lea.vmem [#allocation2], %s162
        %p164 = scmp.lt.s32.totalorder %s17, 1
        %s165 = scalar_select %p164, %s17, 1
        %s166 = smul.addr %s165, 18
        %s167 = smul.addr %s166, 4
        %s168 = scalar_lea.vmem %s0, %s167
        %v170 = vld [vmem:[%s168] sm:$0xf]
        %v171 = vld [vmem:[%s168 + $0x4] sm:$0xf]
        %v172 = vld [vmem:[%s168 + $0x8] sm:$0xf]
        %v173 = vld [vmem:[%s168 + $0xc] sm:$0xf]
        %v174 = vld [vmem:[%s168 + $0x10] sm:$0xf]
        %v175 = vld [vmem:[%s168 + $0x14] sm:$0xf]
        %v176 = vld [vmem:[%s168 + $0x18] sm:$0xf]
        %v177 = vld [vmem:[%s168 + $0x1c] sm:$0xf]
        %v178 = vld [vmem:[%s168 + $0x20] sm:$0xf]
        %v179 = vld [vmem:[%s168 + $0x24] sm:$0xf]
        %v180 = vld [vmem:[%s168 + $0x28] sm:$0xf]
        %v181 = vld [vmem:[%s168 + $0x2c] sm:$0xf]
        %v182 = vld [vmem:[%s168 + $0x30] sm:$0xf]
        %v183 = vld [vmem:[%s168 + $0x34] sm:$0xf]
        %v184 = vld [vmem:[%s168 + $0x38] sm:$0xf]
        %v185 = vld [vmem:[%s168 + $0x3c] sm:$0xf]
        %v186 = vld [vmem:[%s1] sm:$0xf]
        %v187 = vld [vmem:[%s1 + $0x4] sm:$0xf]
        %v188 = vld [vmem:[%s1 + $0x8] sm:$0xf]
        %v189 = vld [vmem:[%s168 + $0x40] sm:$0xf]
        %v190 = vld [vmem:[%s168 + $0x44] sm:$0xf]
        %s191 = scalar_lea.vmem %s1, 12
        %v192 = vld [vmem:[%s191] sm:$0xf]
        %v193 = vld [vmem:[%s191 + $0x4] sm:$0xf]
        %v194 = vld [vmem:[%s191 + $0x8] sm:$0xf]
        %v211 = vunpack.c.l.b16 %v172
        %v212 = vunpack.c.l.b16 %v173
        %v213 = vunpack.c.l.b16 %v174
        %v214 = vunpack.c.l.b16 %v175
        %v215 = vunpack.c.l.b16 %v176
        %v216 = vunpack.c.l.b16 %v177
        %v217 = vunpack.c.l.b16 %v178
        %v218 = vunpack.c.l.b16 %v179
        %v219 = vunpack.c.l.b16 %v180
        %v220 = vunpack.c.l.b16 %v181
        %v221 = vunpack.c.l.b16 %v182
        %v222 = vunpack.c.l.b16 %v183
        %v223 = vunpack.c.l.b16 %v184
        %v224 = vunpack.c.l.b16 %v185
        %v225 = vunpack.c.l.b16 %v189
        %v226 = vunpack.c.l.b16 %v190
        %v227 = vpack.c.b16 %v212, %v211
        %v228 = vpack.c.b16 %v214, %v213
        %v229 = vpack.c.b16 %v216, %v215
        %v230 = vpack.c.b16 %v218, %v217
        %v231 = vpack.c.b16 %v220, %v219
        %v232 = vpack.c.b16 %v222, %v221
        %v233 = vpack.c.b16 %v224, %v223
        %v234 = vpack.c.b16 %v226, %v225
        %v238 = vunpack.c.l.b16 %v192
        %v239 = vunpack.c.l.b16 %v193
        %v240 = vunpack.c.l.b16 %v194
        %v241 = vpack.c.b16 %v239, %v238
        %v242 = vpack.c.b16 %v240, %v240
        %vm244 = vcmask 195584
        %v246 = vsel %vm244, %v227, 0
        %v249 = vsel %vm244, %v228, 0
        %v252 = vsel %vm244, %v229, 0
        %v255 = vsel %vm244, %v230, 0
        %v258 = vsel %vm244, %v231, 0
        %v261 = vsel %vm244, %v232, 0
        %v264 = vsel %vm244, %v233, 0
        %v267 = vsel %vm244, %v234, 0
        %vm269 = vcmask 1043456
        %v271 = vsel %vm269, %v242, 0
        %273 = vmatprep.subr.bf16.mxu0 0
        %274 = vmatpush1.bf16.msra.mxu0 %v241
        %275 = vmatprep.subr.bf16.mxu0 0
        %276 = vmatpush1.bf16.msra.mxu0 %v271
        %277 = vmatprep.subr.bf16.mxu0 0
        %278 = vmatpush1.bf16.msra.mxu0 0
        %279 = vmatprep.subr.bf16.mxu0 0
        %280 = vmatpush1.bf16.msra.mxu0 0
        %281 = vmatprep.subr.bf16.mxu0 0
        %282 = vmatpush1.bf16.msra.mxu0 0
        %283 = vmatprep.subr.bf16.mxu0 0
        %284 = vmatpush1.bf16.msra.mxu0 0
        %285 = vmatprep.subr.bf16.mxu0 0
        %286 = vmatpush1.bf16.msra.mxu0 0
        %287 = vmatprep.subr.bf16.mxu0 0
        %288 = vmatpush1.bf16.msra.mxu0 0
        %289 = vmatprep.subr.bf16.mxu0 0
        %290 = vmatpush1.bf16.msra.mxu0 0
        %291 = vmatprep.subr.bf16.mxu0 0
        %292 = vmatpush1.bf16.msra.mxu0 0
        %293 = vmatprep.subr.bf16.mxu0 0
        %294 = vmatpush1.bf16.msra.mxu0 0
        %295 = vmatprep.subr.bf16.mxu0 0
        %296 = vmatpush1.bf16.msra.mxu0 0
        %297 = vmatprep.subr.bf16.mxu0 0
        %298 = vmatpush1.bf16.msra.mxu0 0
        %299 = vmatprep.subr.bf16.mxu0 0
        %300 = vmatpush1.bf16.msra.mxu0 0
        %301 = vmatprep.subr.bf16.mxu0 0
        %302 = vmatpush1.bf16.msra.mxu0 0
        %303 = vmatprep.subr.bf16.mxu0 0
        %304 = vmatpush1.bf16.msra.mxu0 0
        %305 = vmatprep.mubr.bf16.mxu0 0
        %306 = vmatmul.mubr.bf16.gmra.mrb[0].mxu0 %v246
        %v307 = vpop.f32.mrb[0].mxu0
        %v308 = vadd.f32 0.0, %v307
        %v309 = vpop.f32.mrb[0].mxu0
        %v310 = vpop.f32.mrb[0].mxu0
        %v311 = vadd.f32 0.0, %v310
        %v312 = vpop.f32.mrb[0].mxu0
        %313 = vmatprep.mubr.bf16.mxu0 0
        %314 = vmatmul.mubr.bf16.gmra.mrb[0].mxu0 %v249
        %v315 = vpop.f32.mrb[0].mxu0
        %v316 = vadd.f32 0.0, %v315
        %v317 = vpop.f32.mrb[0].mxu0
        %v318 = vpop.f32.mrb[0].mxu0
        %v319 = vadd.f32 0.0, %v318
        %v320 = vpop.f32.mrb[0].mxu0
        %321 = vmatprep.mubr.bf16.mxu0 0
        %322 = vmatmul.mubr.bf16.gmra.mrb[0].mxu0 %v252
        %v323 = vpop.f32.mrb[0].mxu0
        %v324 = vadd.f32 0.0, %v323
        %v325 = vpop.f32.mrb[0].mxu0
        %v326 = vpop.f32.mrb[0].mxu0
        %v327 = vadd.f32 0.0, %v326
        %v328 = vpop.f32.mrb[0].mxu0
        %329 = vmatprep.mubr.bf16.mxu0 0
        %330 = vmatmul.mubr.bf16.gmra.mrb[0].mxu0 %v255
        %v331 = vpop.f32.mrb[0].mxu0
        %v332 = vadd.f32 0.0, %v331
        %v333 = vpop.f32.mrb[0].mxu0
        %v334 = vpop.f32.mrb[0].mxu0
        %v335 = vadd.f32 0.0, %v334
        %v336 = vpop.f32.mrb[0].mxu0
        %337 = vmatprep.mubr.bf16.mxu0 0
        %338 = vmatmul.mubr.bf16.gmra.mrb[0].mxu0 %v258
        %v339 = vpop.f32.mrb[0].mxu0
        %v340 = vadd.f32 0.0, %v339
        %v341 = vpop.f32.mrb[0].mxu0
        %v342 = vpop.f32.mrb[0].mxu0
        %v343 = vadd.f32 0.0, %v342
        %v344 = vpop.f32.mrb[0].mxu0
        %345 = vmatprep.mubr.bf16.mxu0 0
        %346 = vmatmul.mubr.bf16.gmra.mrb[0].mxu0 %v261
        %v347 = vpop.f32.mrb[0].mxu0
        %v348 = vadd.f32 0.0, %v347
        %v349 = vpop.f32.mrb[0].mxu0
        %v350 = vpop.f32.mrb[0].mxu0
        %v351 = vadd.f32 0.0, %v350
        %v352 = vpop.f32.mrb[0].mxu0
        %353 = vmatprep.mubr.bf16.mxu0 0
        %354 = vmatmul.mubr.bf16.gmra.mrb[0].mxu0 %v264
        %v355 = vpop.f32.mrb[0].mxu0
        %v356 = vadd.f32 0.0, %v355
        %v357 = vpop.f32.mrb[0].mxu0
        %v358 = vpop.f32.mrb[0].mxu0
        %v359 = vadd.f32 0.0, %v358
        %v360 = vpop.f32.mrb[0].mxu0
        %361 = vmatprep.mubr.bf16.mxu0 0
        %362 = vmatmul.mubr.bf16.gmra.mrb[0].mxu0 %v267
        %v363 = vpop.f32.mrb[0].mxu0
        %v364 = vadd.f32 0.0, %v363
        %v365 = vpop.f32.mrb[0].mxu0
        %v366 = vpop.f32.mrb[0].mxu0
        %v367 = vadd.f32 0.0, %v366
        %v368 = vpop.f32.mrb[0].mxu0
        %369 = vdwg.mxu0
        %v372 = vunpack.c.l.b16 %v170
        %v373 = vunpack.c.l.b16 %v171
        %v374 = vpack.c.b16 %v373, %v372
        %v378 = vunpack.c.l.b16 %v186
        %v379 = vunpack.c.l.b16 %v187
        %v380 = vunpack.c.l.b16 %v188
        %v381 = vpack.c.b16 %v379, %v378
        %v382 = vpack.c.b16 %v380, %v380
        %v385 = vsel %vm244, %v374, 0
        %v388 = vsel %vm269, %v382, 0
        %390 = vmatprep.subr.bf16.mxu0 0
        %391 = vmatpush1.bf16.msra.mxu0 %v381
        %392 = vmatprep.subr.bf16.mxu0 0
        %393 = vmatpush1.bf16.msra.mxu0 %v388
        %394 = vmatprep.subr.bf16.mxu0 0
        %395 = vmatpush1.bf16.msra.mxu0 0
        %396 = vmatprep.subr.bf16.mxu0 0
        %397 = vmatpush1.bf16.msra.mxu0 0
        %398 = vmatprep.subr.bf16.mxu0 0
        %399 = vmatpush1.bf16.msra.mxu0 0
        %400 = vmatprep.subr.bf16.mxu0 0
        %401 = vmatpush1.bf16.msra.mxu0 0
        %402 = vmatprep.subr.bf16.mxu0 0
        %403 = vmatpush1.bf16.msra.mxu0 0
        %404 = vmatprep.subr.bf16.mxu0 0
        %405 = vmatpush1.bf16.msra.mxu0 0
        %406 = vmatprep.subr.bf16.mxu0 0
        %407 = vmatpush1.bf16.msra.mxu0 0
        %408 = vmatprep.subr.bf16.mxu0 0
        %409 = vmatpush1.bf16.msra.mxu0 0
        %410 = vmatprep.subr.bf16.mxu0 0
        %411 = vmatpush1.bf16.msra.mxu0 0
        %412 = vmatprep.subr.bf16.mxu0 0
        %413 = vmatpush1.bf16.msra.mxu0 0
        %414 = vmatprep.subr.bf16.mxu0 0
        %415 = vmatpush1.bf16.msra.mxu0 0
        %416 = vmatprep.subr.bf16.mxu0 0
        %417 = vmatpush1.bf16.msra.mxu0 0
        %418 = vmatprep.subr.bf16.mxu0 0
        %419 = vmatpush1.bf16.msra.mxu0 0
        %420 = vmatprep.subr.bf16.mxu0 0
        %421 = vmatpush1.bf16.msra.mxu0 0
        %422 = vmatprep.mubr.bf16.mxu0 0
        %423 = vmatmul.mubr.bf16.gmra.mrb[0].mxu0 %v385
        %v424 = vpop.f32.mrb[0].mxu0
        %v425 = vadd.f32 %v308, %v424
        %v426 = vpop.f32.mrb[0].mxu0
        %v427 = vpop.f32.mrb[0].mxu0
        %v428 = vadd.f32 %v311, %v427
        %v429 = vpop.f32.mrb[0].mxu0
        %430 = vmatprep.mubr.bf16.mxu0 0
        %431 = vmatmul.mubr.bf16.gmra.mrb[0].mxu0 %v246
        %v432 = vpop.f32.mrb[0].mxu0
        %v433 = vadd.f32 %v316, %v432
        %v434 = vpop.f32.mrb[0].mxu0
        %v435 = vpop.f32.mrb[0].mxu0
        %v436 = vadd.f32 %v319, %v435
        %v437 = vpop.f32.mrb[0].mxu0
        %438 = vmatprep.mubr.bf16.mxu0 0
        %439 = vmatmul.mubr.bf16.gmra.mrb[0].mxu0 %v249
        %v440 = vpop.f32.mrb[0].mxu0
        %v441 = vadd.f32 %v324, %v440
        %v442 = vpop.f32.mrb[0].mxu0
        %v443 = vpop.f32.mrb[0].mxu0
        %v444 = vadd.f32 %v327, %v443
        %v445 = vpop.f32.mrb[0].mxu0
        %446 = vmatprep.mubr.bf16.mxu0 0
        %447 = vmatmul.mubr.bf16.gmra.mrb[0].mxu0 %v252
        %v448 = vpop.f32.mrb[0].mxu0
        %v449 = vadd.f32 %v332, %v448
        %v450 = vpop.f32.mrb[0].mxu0
        %v451 = vpop.f32.mrb[0].mxu0
        %v452 = vadd.f32 %v335, %v451
        %v453 = vpop.f32.mrb[0].mxu0
        %454 = vmatprep.mubr.bf16.mxu0 0
        %455 = vmatmul.mubr.bf16.gmra.mrb[0].mxu0 %v255
        %v456 = vpop.f32.mrb[0].mxu0
        %v457 = vadd.f32 %v340, %v456
        %v458 = vpop.f32.mrb[0].mxu0
        %v459 = vpop.f32.mrb[0].mxu0
        %v460 = vadd.f32 %v343, %v459
        %v461 = vpop.f32.mrb[0].mxu0
        %462 = vmatprep.mubr.bf16.mxu0 0
        %463 = vmatmul.mubr.bf16.gmra.mrb[0].mxu0 %v258
        %v464 = vpop.f32.mrb[0].mxu0
        %v465 = vadd.f32 %v348, %v464
        %v466 = vpop.f32.mrb[0].mxu0
        %v467 = vpop.f32.mrb[0].mxu0
        %v468 = vadd.f32 %v351, %v467
        %v469 = vpop.f32.mrb[0].mxu0
        %470 = vmatprep.mubr.bf16.mxu0 0
        %471 = vmatmul.mubr.bf16.gmra.mrb[0].mxu0 %v261
        %v472 = vpop.f32.mrb[0].mxu0
        %v473 = vadd.f32 %v356, %v472
        %v474 = vpop.f32.mrb[0].mxu0
        %v475 = vpop.f32.mrb[0].mxu0
        %v476 = vadd.f32 %v359, %v475
        %v477 = vpop.f32.mrb[0].mxu0
        %478 = vmatprep.mubr.bf16.mxu0 0
        %479 = vmatmul.mubr.bf16.gmra.mrb[0].mxu0 %v264
        %v480 = vpop.f32.mrb[0].mxu0
        %v481 = vadd.f32 %v364, %v480
        %v482 = vpop.f32.mrb[0].mxu0
        %v483 = vpop.f32.mrb[0].mxu0
        %v484 = vadd.f32 %v367, %v483
        %v485 = vpop.f32.mrb[0].mxu0
        %486 = vdwg.mxu0
        %v487 = vld [vmem:[%s2] sm:$0xff]
        %488 = vmatprep.subr.mxu0 0.0
        %489 = vmatpush1.msra.mxu0 %v425
        %490 = vmatprep.subr.mxu0 0.0
        %491 = vmatpush1.msra.mxu0 %v428
        %492 = vmatprep.subr.mxu0 0.0
        %493 = vmatpush1.msra.mxu0 %v433
        %494 = vmatprep.subr.mxu0 0.0
        %495 = vmatpush1.msra.mxu0 %v436
        %496 = vmatprep.subr.mxu0 0.0
        %497 = vmatpush1.msra.mxu0 %v441
        %498 = vmatprep.subr.mxu0 0.0
        %499 = vmatpush1.msra.mxu0 %v444
        %500 = vmatprep.subr.mxu0 0.0
        %501 = vmatpush1.msra.mxu0 %v449
        %502 = vmatprep.subr.mxu0 0.0
        %503 = vmatpush1.msra.mxu0 %v452
        %504 = vmatprep.subr.mxu0 0.0
        %505 = vmatpush1.msra.mxu0 %v457
        %506 = vmatprep.subr.mxu0 0.0
        %507 = vmatpush1.msra.mxu0 %v460
        %508 = vmatprep.subr.mxu0 0.0
        %509 = vmatpush1.msra.mxu0 %v465
        %510 = vmatprep.subr.mxu0 0.0
        %511 = vmatpush1.msra.mxu0 %v468
        %512 = vmatprep.subr.mxu0 0.0
        %513 = vmatpush1.msra.mxu0 %v473
        %514 = vmatprep.subr.mxu0 0.0
        %515 = vmatpush1.msra.mxu0 %v476
        %516 = vmatprep.subr.mxu0 0.0
        %517 = vmatpush1.msra.mxu0 %v481
        %518 = vmatprep.subr.mxu0 0.0
        %519 = vmatpush1.msra.mxu0 %v484
        %520 = vmatprep.subr.mxu0 0.0
        %521 = vmatpush1.msra.mxu0 0.0
        %522 = vmatprep.subr.mxu0 0.0
        %523 = vmatpush1.msra.mxu0 0.0
        %524 = vmatprep.subr.mxu0 0.0
        %525 = vmatpush1.msra.mxu0 0.0
        %526 = vmatprep.subr.mxu0 0.0
        %527 = vmatpush1.msra.mxu0 0.0
        %528 = vmatprep.subr.mxu0 0.0
        %529 = vmatpush1.msra.mxu0 0.0
        %530 = vmatprep.subr.mxu0 0.0
        %531 = vmatpush1.msra.mxu0 0.0
        %532 = vmatprep.subr.mxu0 0.0
        %533 = vmatpush1.msra.mxu0 0.0
        %534 = vmatprep.subr.mxu0 0.0
        %535 = vmatpush1.msra.mxu0 0.0
        %536 = vmatprep.subr.mxu0 0.0
        %537 = vmatpush1.msra.mxu0 0.0
        %538 = vmatprep.subr.mxu0 0.0
        %539 = vmatpush1.msra.mxu0 0.0
        %540 = vmatprep.subr.mxu0 0.0
        %541 = vmatpush1.msra.mxu0 0.0
        %542 = vmatprep.subr.mxu0 0.0
        %543 = vmatpush1.msra.mxu0 0.0
        %544 = vmatprep.subr.mxu0 0.0
        %545 = vmatpush1.msra.mxu0 0.0
        %546 = vmatprep.subr.mxu0 0.0
        %547 = vmatpush1.msra.mxu0 0.0
        %548 = vmatprep.subr.mxu0 0.0
        %549 = vmatpush1.msra.mxu0 0.0
        %550 = vmatprep.subr.mxu0 0.0
        %551 = vmatpush1.msra.mxu0 0.0
        %552 = vmatprep.mubr.f32.mxu0 0.0
        %553 = vmatmul.mubr.f32.gmra.mrb[0].mxu0 %v487
        %v554 = vpop.f32.mrb[0].mxu0
        %v555 = vadd.f32 0.0, %v554
        %v556 = vpop.f32.mrb[0].mxu0
        %557 = vdwg.mxu0
        %v558 = vmul.f32 %v555, 0.015625
        %v559 = vlaneseq
        %v560 = vshrl.u32 %v559, 7
        %v561 = vsub.s32 0, %v560
        %v562 = vrot.slane %v558, %v561
        %v563 = vsub.f32 %v425, %v562
        %v564 = vsub.f32 %v428, %v562
        %v565 = vsub.f32 %v433, %v562
        %v566 = vsub.f32 %v436, %v562
        %v567 = vsub.f32 %v441, %v562
        %v568 = vsub.f32 %v444, %v562
        %v569 = vsub.f32 %v449, %v562
        %v570 = vsub.f32 %v452, %v562
        %v571 = vsub.f32 %v457, %v562
        %v572 = vsub.f32 %v460, %v562
        %v573 = vsub.f32 %v465, %v562
        %v574 = vsub.f32 %v468, %v562
        %v575 = vsub.f32 %v473, %v562
        %v576 = vsub.f32 %v476, %v562
        %v577 = vsub.f32 %v481, %v562
        %v578 = vsub.f32 %v484, %v562
        %v579 = vmul.f32 %v563, %v563
        %v580 = vmul.f32 %v564, %v564
        %v581 = vmul.f32 %v565, %v565
        %v582 = vmul.f32 %v566, %v566
        %v583 = vmul.f32 %v567, %v567
        %v584 = vmul.f32 %v568, %v568
        %v585 = vmul.f32 %v569, %v569
        %v586 = vmul.f32 %v570, %v570
        %v587 = vmul.f32 %v571, %v571
        %v588 = vmul.f32 %v572, %v572
        %v589 = vmul.f32 %v573, %v573
        %v590 = vmul.f32 %v574, %v574
        %v591 = vmul.f32 %v575, %v575
        %v592 = vmul.f32 %v576, %v576
        %v593 = vmul.f32 %v577, %v577
        %v594 = vmul.f32 %v578, %v578
        %595 = vmatprep.subr.mxu0 0.0
        %596 = vmatpush1.msra.mxu0 %v579
        %597 = vmatprep.subr.mxu0 0.0
        %598 = vmatpush1.msra.mxu0 %v580
        %599 = vmatprep.subr.mxu0 0.0
        %600 = vmatpush1.msra.mxu0 %v581
        %601 = vmatprep.subr.mxu0 0.0
        %602 = vmatpush1.msra.mxu0 %v582
        %603 = vmatprep.subr.mxu0 0.0
        %604 = vmatpush1.msra.mxu0 %v583
        %605 = vmatprep.subr.mxu0 0.0
        %606 = vmatpush1.msra.mxu0 %v584
        %607 = vmatprep.subr.mxu0 0.0
        %608 = vmatpush1.msra.mxu0 %v585
        %609 = vmatprep.subr.mxu0 0.0
        %610 = vmatpush1.msra.mxu0 %v586
        %611 = vmatprep.subr.mxu0 0.0
        %612 = vmatpush1.msra.mxu0 %v587
        %613 = vmatprep.subr.mxu0 0.0
        %614 = vmatpush1.msra.mxu0 %v588
        %615 = vmatprep.subr.mxu0 0.0
        %616 = vmatpush1.msra.mxu0 %v589
        %617 = vmatprep.subr.mxu0 0.0
        %618 = vmatpush1.msra.mxu0 %v590
        %619 = vmatprep.subr.mxu0 0.0
        %620 = vmatpush1.msra.mxu0 %v591
        %621 = vmatprep.subr.mxu0 0.0
        %622 = vmatpush1.msra.mxu0 %v592
        %623 = vmatprep.subr.mxu0 0.0
        %624 = vmatpush1.msra.mxu0 %v593
        %625 = vmatprep.subr.mxu0 0.0
        %626 = vmatpush1.msra.mxu0 %v594
        %627 = vmatprep.subr.mxu0 0.0
        %628 = vmatpush1.msra.mxu0 0.0
        %629 = vmatprep.subr.mxu0 0.0
        %630 = vmatpush1.msra.mxu0 0.0
        %631 = vmatprep.subr.mxu0 0.0
        %632 = vmatpush1.msra.mxu0 0.0
        %633 = vmatprep.subr.mxu0 0.0
        %634 = vmatpush1.msra.mxu0 0.0
        %635 = vmatprep.subr.mxu0 0.0
        %636 = vmatpush1.msra.mxu0 0.0
        %637 = vmatprep.subr.mxu0 0.0
        %638 = vmatpush1.msra.mxu0 0.0
        %639 = vmatprep.subr.mxu0 0.0
        %640 = vmatpush1.msra.mxu0 0.0
        %641 = vmatprep.subr.mxu0 0.0
        %642 = vmatpush1.msra.mxu0 0.0
        %643 = vmatprep.subr.mxu0 0.0
        %644 = vmatpush1.msra.mxu0 0.0
        %645 = vmatprep.subr.mxu0 0.0
        %646 = vmatpush1.msra.mxu0 0.0
        %647 = vmatprep.subr.mxu0 0.0
        %648 = vmatpush1.msra.mxu0 0.0
        %649 = vmatprep.subr.mxu0 0.0
        %650 = vmatpush1.msra.mxu0 0.0
        %651 = vmatprep.subr.mxu0 0.0
        %652 = vmatpush1.msra.mxu0 0.0
        %653 = vmatprep.subr.mxu0 0.0
        %654 = vmatpush1.msra.mxu0 0.0
        %655 = vmatprep.subr.mxu0 0.0
        %656 = vmatpush1.msra.mxu0 0.0
        %657 = vmatprep.subr.mxu0 0.0
        %658 = vmatpush1.msra.mxu0 0.0
        %659 = vmatprep.mubr.f32.mxu0 0.0
        %660 = vmatmul.mubr.f32.gmra.mrb[0].mxu0 %v487
        %v661 = vpop.f32.mrb[0].mxu0
        %v662 = vadd.f32 0.0, %v661
        %v663 = vpop.f32.mrb[0].mxu0
        %664 = vdwg.mxu0
        %v665 = vmul.f32 %v662, 0.015625
        %v666 = vadd.f32 %v665, 1e-05
        %v667 = vrsqrt.pop %v666
        %v668 = vlaneseq
        %v669 = vshrl.u32 %v668, 7
        %v670 = vsub.s32 0, %v669
        %v671 = vrot.slane %v667, %v670
        %v672 = vmul.f32 %v563, %v671
        %v673 = vmul.f32 %v564, %v671
        %v674 = vmul.f32 %v565, %v671
        %v675 = vmul.f32 %v566, %v671
        %v676 = vmul.f32 %v567, %v671
        %v677 = vmul.f32 %v568, %v671
        %v678 = vmul.f32 %v569, %v671
        %v679 = vmul.f32 %v570, %v671
        %v680 = vmul.f32 %v571, %v671
        %v681 = vmul.f32 %v572, %v671
        %v682 = vmul.f32 %v573, %v671
        %v683 = vmul.f32 %v574, %v671
        %v684 = vmul.f32 %v575, %v671
        %v685 = vmul.f32 %v576, %v671
        %v686 = vmul.f32 %v577, %v671
        %v687 = vmul.f32 %v578, %v671
        %v688 = vmax.f32 %v672, 0.0
        %v689 = vmax.f32 %v673, 0.0
        %v690 = vmax.f32 %v674, 0.0
        %v691 = vmax.f32 %v675, 0.0
        %v692 = vmax.f32 %v676, 0.0
        %v693 = vmax.f32 %v677, 0.0
        %v694 = vmax.f32 %v678, 0.0
        %v695 = vmax.f32 %v679, 0.0
        %v696 = vmax.f32 %v680, 0.0
        %v697 = vmax.f32 %v681, 0.0
        %v698 = vmax.f32 %v682, 0.0
        %v699 = vmax.f32 %v683, 0.0
        %v700 = vmax.f32 %v684, 0.0
        %v701 = vmax.f32 %v685, 0.0
        %v702 = vmax.f32 %v686, 0.0
        %v703 = vmax.f32 %v687, 0.0
        %704 = vst [vmem:[%s163] sm:$0xff] %v688
        %705 = vst [vmem:[%s163 + $0x8] sm:$0xff] %v689
        %706 = vst [vmem:[%s163 + $0x10] sm:$0xff] %v690
        %707 = vst [vmem:[%s163 + $0x18] sm:$0xff] %v691
        %708 = vst [vmem:[%s163 + $0x20] sm:$0xff] %v692
        %709 = vst [vmem:[%s163 + $0x28] sm:$0xff] %v693
        %710 = vst [vmem:[%s163 + $0x30] sm:$0xff] %v694
        %711 = vst [vmem:[%s163 + $0x38] sm:$0xff] %v695
        %712 = vst [vmem:[%s163 + $0x40] sm:$0xff] %v696
        %713 = vst [vmem:[%s163 + $0x48] sm:$0xff] %v697
        %714 = vst [vmem:[%s163 + $0x50] sm:$0xff] %v698
        %715 = vst [vmem:[%s163 + $0x58] sm:$0xff] %v699
        %716 = vst [vmem:[%s163 + $0x60] sm:$0xff] %v700
        %717 = vst [vmem:[%s163 + $0x68] sm:$0xff] %v701
        %718 = vst [vmem:[%s163 + $0x70] sm:$0xff] %v702
        %719 = vst [vmem:[%s163 + $0x78] sm:$0xff] %v703
        %s720 = sand.u32 %s93, 1
        %s721 = scalar_lea.sflag [#allocation3], %s720
        %s722 = sand.u32 %s93, 1
        %s723 = smul.addr %s722, 128
        %s724 = scalar_lea.vmem [#allocation2], %s723
        // Predicated region
        $region33: #{tpu_custom_call.1} parent=31 // pred_check
          %p725 = pneg %p103
        $region34: #{tpu_custom_call.1} parent=31 // pred_check_branch
          %727 = sbr.rel (%p725) target = $region36
        $region35: #{tpu_custom_call.1} parent=31 // pred_region
          %s729 = ssub.s32 2048, 2048
          %730 = vsyncadd %s721, %s729
          %s731 = smul.addr %s17, 16
          %s732 = smul.addr %s731, 128
          %s733 = scalar_lea.hbm %s3, %s732
          %s734 = sshll.u32 %s724, 4
          %s735 = int_to_ptr.vmem [resolvable:$true] %s734
          %740 = dma.vmem_to_hbm [thread:$0]  %s735, 2048, %s733, %s721, 128, 128, 8
        $region36: #{tpu_custom_call.1} parent=31 // pred_fallthru
          _
      $region32: #{tpu_custom_call.1} parent=5 // pred_fallthru
        _
      %p741 = scmp.le.s32.totalorder 2, %s12
      // Predicated region
      $region37: #{tpu_custom_call.1} parent=5 // pred_check
        %p742 = pneg %p741
      $region38: #{tpu_custom_call.1} parent=5 // pred_check_branch
        %744 = sbr.rel (%p742) target = $region40
      $region39: #{tpu_custom_call.1} parent=5 // pred_region
        %s745 = ssub.s32 %s12, 2
        // Predicated region
        $region41: #{tpu_custom_call.1} parent=39 // pred_check
          %p746 = pneg %p109
        $region42: #{tpu_custom_call.1} parent=39 // pred_check_branch
          %748 = sbr.rel (%p746) target = $region44
        $region43: #{tpu_custom_call.1} parent=39 // pred_region
          %s749 = sand.u32 %s94, 1
          %s750 = scalar_lea.sflag [#allocation3], %s749
          %s751 = sand.u32 %s94, 1
          %s752 = smul.addr %s751, 128
          %s753 = scalar_lea.vmem [#allocation2], %s752
          %754 = dma.done %s750, 2048
        $region44: #{tpu_custom_call.1} parent=39 // pred_fallthru
          _
      $region40: #{tpu_custom_call.1} parent=5 // pred_fallthru
        _
    $region6: #{tpu_custom_call.1} parent=1 // loop_footer
      %s16 = sadd.s32 1, %s12
    $region7: #{tpu_custom_call.1} parent=1 // loop_footer_branch
      %11 = sbr.rel target = $region3
    $region8: #{tpu_custom_call.1} parent=1 // loop_exit
      _
    %755 = vsyncpa [#allocation3], 1
    %s756 = scalar_lea.sflag [#allocation3], 1
    %757 = vsyncpa %s756, 1

</llo_original>
